<compile_context>
chip_gen: v7x
topology: tpu7x:2x2x1
jax: 0.10.0
libtpu: 0.0.40
codegen_flags: <defaults>
</compile_context>

<pallas_src>
import functools

import jax
import jax.numpy as jnp
from jax.experimental import pallas as pl
from jax.experimental.pallas import tpu as pltpu

# Module hyper-parameters (from __init__ defaults).
ALPHA = 0.8
GAMMA = 2          # implemented as p*p below (VPU mul, not float pow)
SMOOTH = 1e-4
FOCAL_W = 20.0
DICE_W = 1.0
IOU_W = 1.0
MASK_THRESHOLD = 0.0


def _mask_reduce_kernel(stu_ref, tea_ref, part_ref, *, rows):
    """Per (idx, H-tile) reductions.

    stu_ref / tea_ref : (B, TH, W) VMEM tile for the current (idx, h) step
    part_ref          : (4, rows, W) VMEM output block, resident across the H
                        axis for a given idx; rows 0..3 hold lane-parallel
                        partial sums of [focal, sig*tea, sig, tea].
    """
    h = pl.program_id(1)

    @pl.when(h == 0)
    def _():
        part_ref[...] = jnp.zeros_like(part_ref)

    x = stu_ref[...].astype(jnp.float32)                       # (B, TH, W)
    t = (tea_ref[...].astype(jnp.float32) >
         MASK_THRESHOLD).astype(jnp.float32)

    # --- one exp, one log1p, one divide per element -------------------------
    e = jnp.exp(-jnp.abs(x))                # EUP exp
    log_term = jnp.log1p(e)                 # EUP log1p
    # Stable BCE-with-logits: max(x,0) - x*t + log1p(exp(-|x|))
    bce = jnp.maximum(x, 0.0) - x * t + log_term

    # sigmoid(x) from e:  x>=0 -> 1/(1+e),  x<0 -> e/(1+e)
    # (exact divide kept for accuracy; pl.reciprocal(approx=True) is a further
    #  EUP saving at a small precision cost if tolerances allow)
    inv = 1.0 / (1.0 + e)
    sig = jnp.where(x >= 0.0, inv, e * inv)

    # pt = exp(-bce) algebraically: pt = t*sig + (1-t)*(1-sig)
    # => 1-pt = t + sig - 2*t*sig   (pure VPU; no second exp)
    one_minus_pt = t + sig - 2.0 * t * sig
    focal = ALPHA * one_minus_pt * one_minus_pt * bce          # gamma = 2

    w = x.shape[-1]

    def lane_partial(q):
        # (B, TH, W) -> (rows, W): leading-axis sums are elementwise vreg
        # adds (VPU); no cross-lane XLU reduction inside the kernel.
        return jnp.sum(q.reshape(-1, rows, w), axis=0)

    part_ref[0] += lane_partial(focal)
    part_ref[1] += lane_partial(sig * t)
    part_ref[2] += lane_partial(sig)
    part_ref[3] += lane_partial(t)


def _choose_th(B, H, W, itemsize, tile_budget_bytes):
    """Largest H-tile (multiple of 8, dividing H) fitting the VMEM budget."""
    if H % 8 != 0:
        return H                      # odd heights: fall back to whole-H slab
    row_bytes = max(1, B * W * itemsize)
    max_rows = max(8, (tile_budget_bytes // row_bytes) // 8 * 8)
    best = 8
    th = 8
    while th <= H:
        if H % th == 0 and th <= max_rows:
            best = th
        th += 8
    return best


def sam_distill_loss(tea_inputs, stu_inputs, targets=None,
                     tile_budget_bytes=2 * 1024 * 1024):
    """Mirrors SAMDistillLoss.forward (targets is unused, as in the module)."""
    tea_masks, tea_ious = tea_inputs
    stu_masks, stu_ious = stu_inputs
    assert tea_masks.shape[1] == tea_ious.shape[1]
    assert stu_masks.shape[1] == stu_ious.shape[1]
    assert tea_masks.shape == stu_masks.shape

    B, I, H, W = stu_masks.shape
    itemsize = jnp.dtype(stu_masks.dtype).itemsize

    th = _choose_th(B, H, W, itemsize, tile_budget_bytes)
    n_h = H // th
    rows = 8 if (B * th) % 8 == 0 else B * th

    cost = pl.CostEstimate(
        flops=18 * B * I * H * W,
        transcendentals=3 * B * I * H * W,
        bytes_accessed=2 * B * I * H * W * itemsize + I * 4 * rows * W * 4,
    )

    # TODO(synk): sweep pipeline_mode=pl.Buffered(3) on the mask in_specs if
    # DMA latency is still exposed after the EUP reduction (mem-bound v5e).
    part = pl.pallas_call(
        functools.partial(_mask_reduce_kernel, rows=rows),
        grid=(I, n_h),
        in_specs=[
            pl.BlockSpec((B, None, th, W), lambda i, h: (0, i, h, 0)),  # stu
            pl.BlockSpec((B, None, th, W), lambda i, h: (0, i, h, 0)),  # tea
        ],
        out_specs=pl.BlockSpec((None, 4, rows, W), lambda i, h: (i, 0, 0, 0)),
        out_shape=jax.ShapeDtypeStruct((I, 4, rows, W), jnp.float32),
        compiler_params=pltpu.CompilerParams(
            dimension_semantics=("parallel", "arbitrary"),
            vmem_limit_bytes=32 * 1024 * 1024,
        ),
        cost_estimate=cost,
    )(stu_masks, tea_masks)

    # Tiny epilogue in plain JAX: cross-lane reduce of the per-idx partials
    # plus the scalar loss math and the trivial IOU MSE term.
    red = jnp.sum(part, axis=(2, 3))                       # (I, 4)
    n_per_idx = jnp.float32(B * H * W)

    # focal: per-idx mean over (B,H,W), summed over idx, / batch, * weight
    focal_loss = FOCAL_W * jnp.sum(red[:, 0] / n_per_idx) / B
    # dice: per-idx ratio, summed over idx, / batch, * weight
    dice = 1.0 - (2.0 * red[:, 1] + SMOOTH) / (red[:, 2] + red[:, 3] + SMOOTH)
    dice_loss = DICE_W * jnp.sum(dice) / B
    # iou predict: sum of squared errors over (B, I), / batch, * weight
    d = stu_ious.astype(jnp.float32) - tea_ious.astype(jnp.float32)
    iou_loss = IOU_W * jnp.sum(d * d) / B

    return {
        'distill_focal_loss': focal_loss,
        'distill_dice_loss': dice_loss,
        'distill_iou_predict_loss': iou_loss,
    }


def sam_distill_loss_ref(tea_inputs, stu_inputs, targets=None):
    """Pure-JAX reference matching the PyTorch module semantics."""
    tea_masks, tea_ious = tea_inputs
    stu_masks, stu_ious = stu_inputs
    B = stu_masks.shape[0]

    stu = stu_masks.astype(jnp.float32)
    tea_bin = (tea_masks.astype(jnp.float32) > MASK_THRESHOLD).astype(jnp.float32)

    bce = (jnp.maximum(stu, 0.0) - stu * tea_bin
           + jnp.log1p(jnp.exp(-jnp.abs(stu))))
    focal = ALPHA * (1.0 - jnp.exp(-bce)) ** GAMMA * bce
    focal_loss = FOCAL_W * jnp.sum(jnp.mean(focal, axis=(0, 2, 3))) / B

    sig = jax.nn.sigmoid(stu)
    inter = jnp.sum(sig * tea_bin, axis=(0, 2, 3))
    dice = 1.0 - (2.0 * inter + SMOOTH) / (
        jnp.sum(sig, axis=(0, 2, 3)) + jnp.sum(tea_bin, axis=(0, 2, 3)) + SMOOTH)
    dice_loss = DICE_W * jnp.sum(dice) / B

    iou_loss = IOU_W * jnp.sum(
        (stu_ious.astype(jnp.float32) - tea_ious.astype(jnp.float32)) ** 2) / B

    return {
        'distill_focal_loss': focal_loss,
        'distill_dice_loss': dice_loss,
        'distill_iou_predict_loss': iou_loss,
    }


if __name__ == "__main__":
    B, I, H, W = 2, 4, 16, 16
    key = jax.random.PRNGKey(0)
    k1, k2, k3, k4 = jax.random.split(key, 4)

    tea_masks = jax.random.normal(k1, (B, I, H, W), dtype=jnp.float32) * 2.0
    stu_masks = jax.random.normal(k2, (B, I, H, W), dtype=jnp.float32) * 2.0
    tea_ious = jax.random.uniform(k3, (B, I), dtype=jnp.float32)
    stu_ious = jax.random.uniform(k4, (B, I), dtype=jnp.float32)

    tea_inputs = (tea_masks, tea_ious)
    stu_inputs = (stu_masks, stu_ious)

    # Tiny tile budget so the small test shape still exercises the multi-tile
    # H-axis accumulation path (TH=8 -> 2 H-tiles per idx).
    out = sam_distill_loss(tea_inputs, stu_inputs, targets=None,
                           tile_budget_bytes=1024)
    out = jax.tree_util.tree_map(jax.block_until_ready, out)

    ref = sam_distill_loss_ref(tea_inputs, stu_inputs, targets=None)

    for name in ('distill_focal_loss', 'distill_dice_loss',
                 'distill_iou_predict_loss'):
        a = float(out[name])
        b = float(ref[name])
        assert abs(a - b) <= 1e-4 * (1.0 + abs(b)), (name, a, b)

    print("KERNEL_OK")
</pallas_src>

<mosaic_0001>
module attributes {stable_mosaic.version = 11 : i64} {
  func.func @_mask_reduce_kernel(%arg0: i32, %arg1: i32, %arg2: memref<2x1x8x16xf32, #tpu.memory_space<vmem>>, %arg3: memref<2x1x8x16xf32, #tpu.memory_space<vmem>>, %arg4: memref<1x4x8x16xf32, #tpu.memory_space<vmem>>) attributes {dimension_semantics = [#tpu.dimension_semantics<parallel>, #tpu.dimension_semantics<arbitrary>], iteration_bounds = array<i64: 4, 2>, scalar_prefetch = 0 : i64, scratch_operands = 0 : i64, tpu.core_type = #tpu.core_type<tc>, window_params = [{transform_indices = @transform_0, window_bounds = array<i64: 2, 1, 8, 16>}, {transform_indices = @transform_1, window_bounds = array<i64: 2, 1, 8, 16>}, {transform_indices = @transform_2, window_bounds = array<i64: 1, 4, 8, 16>}]} {
    %c0_i32 = arith.constant 0 : i32
    %0 = arith.cmpi eq, %arg1, %c0_i32 : i32
    %1 = arith.extui %0 : i1 to i32
    %c0_i32_0 = arith.constant 0 : i32
    %2 = arith.cmpi ne, %1, %c0_i32_0 : i32
    scf.if %2 {
      %cst_48 = arith.constant 0.000000e+00 : f32
      %67 = vector.broadcast %cst_48 : f32 to vector<4x8x16xf32>
      %c0_49 = arith.constant 0 : index
      %c0_50 = arith.constant 0 : index
      %c0_51 = arith.constant 0 : index
      %c0_52 = arith.constant 0 : index
      %68 = vector.load %arg4[%c0_49, %c0_50, %c0_51, %c0_52] : memref<1x4x8x16xf32, #tpu.memory_space<vmem>>, vector<1x4x8x16xf32>
      %69 = vector.shape_cast %68 : vector<1x4x8x16xf32> to vector<4x8x16xf32>
      %70 = vector.shape_cast %67 : vector<4x8x16xf32> to vector<1x4x8x16xf32>
      tpu.vector_store %arg4[%c0_49, %c0_50, %c0_51, %c0_52], %70 {strides = array<i32>} : memref<1x4x8x16xf32, #tpu.memory_space<vmem>>, vector<1x4x8x16xf32>,
    } else {
    }
    %c0 = arith.constant 0 : index
    %c0_1 = arith.constant 0 : index
    %c0_2 = arith.constant 0 : index
    %c0_3 = arith.constant 0 : index
    %3 = vector.load %arg2[%c0, %c0_1, %c0_2, %c0_3] : memref<2x1x8x16xf32, #tpu.memory_space<vmem>>, vector<2x1x8x16xf32>
    %4 = vector.shape_cast %3 : vector<2x1x8x16xf32> to vector<2x8x16xf32>
    %c0_4 = arith.constant 0 : index
    %c0_5 = arith.constant 0 : index
    %c0_6 = arith.constant 0 : index
    %c0_7 = arith.constant 0 : index
    %5 = vector.load %arg3[%c0_4, %c0_5, %c0_6, %c0_7] : memref<2x1x8x16xf32, #tpu.memory_space<vmem>>, vector<2x1x8x16xf32>
    %6 = vector.shape_cast %5 : vector<2x1x8x16xf32> to vector<2x8x16xf32>
    %cst = arith.constant 0.000000e+00 : f32
    %7 = vector.broadcast %cst : f32 to vector<2x8x16xf32>
    %8 = arith.cmpf ogt, %6, %7 : vector<2x8x16xf32>
    %9 = arith.extui %8 : vector<2x8x16xi1> to vector<2x8x16xi32>
    %10 = arith.sitofp %9 : vector<2x8x16xi32> to vector<2x8x16xf32>
    %11 = math.absf %4 : vector<2x8x16xf32>
    %cst_8 = arith.constant 0.000000e+00 : f32
    %12 = vector.broadcast %cst_8 : f32 to vector<2x8x16xf32>
    %13 = arith.subf %12, %11 : vector<2x8x16xf32>
    %14 = math.exp %13 : vector<2x8x16xf32>
    %15 = math.log1p %14 : vector<2x8x16xf32>
    %cst_9 = arith.constant 0.000000e+00 : f32
    %16 = vector.broadcast %cst_9 : f32 to vector<2x8x16xf32>
    %17 = arith.maximumf %4, %16 : vector<2x8x16xf32>
    %18 = arith.mulf %4, %10 : vector<2x8x16xf32>
    %19 = arith.subf %17, %18 : vector<2x8x16xf32>
    %20 = arith.addf %19, %15 : vector<2x8x16xf32>
    %cst_10 = arith.constant 1.000000e+00 : f32
    %21 = vector.broadcast %cst_10 : f32 to vector<2x8x16xf32>
    %22 = arith.addf %21, %14 : vector<2x8x16xf32>
    %cst_11 = arith.constant 1.000000e+00 : f32
    %23 = vector.broadcast %cst_11 : f32 to vector<2x8x16xf32>
    %24 = arith.divf %23, %22 : vector<2x8x16xf32>
    %cst_12 = arith.constant 0.000000e+00 : f32
    %25 = vector.broadcast %cst_12 : f32 to vector<2x8x16xf32>
    %26 = arith.cmpf oge, %4, %25 : vector<2x8x16xf32>
    %27 = arith.mulf %14, %24 : vector<2x8x16xf32>
    %28 = arith.select %26, %24, %27 : vector<2x8x16xi1>, vector<2x8x16xf32>
    %29 = arith.addf %10, %28 : vector<2x8x16xf32>
    %cst_13 = arith.constant 2.000000e+00 : f32
    %30 = vector.broadcast %cst_13 : f32 to vector<2x8x16xf32>
    %31 = arith.mulf %30, %10 : vector<2x8x16xf32>
    %32 = arith.mulf %31, %28 : vector<2x8x16xf32>
    %33 = arith.subf %29, %32 : vector<2x8x16xf32>
    %cst_14 = arith.constant 8.000000e-01 : f32
    %34 = vector.broadcast %cst_14 : f32 to vector<2x8x16xf32>
    %35 = arith.mulf %34, %33 : vector<2x8x16xf32>
    %36 = arith.mulf %35, %33 : vector<2x8x16xf32>
    %37 = arith.mulf %36, %20 : vector<2x8x16xf32>
    %c0_15 = arith.constant 0 : index
    %c0_16 = arith.constant 0 : index
    %c0_17 = arith.constant 0 : index
    %c0_18 = arith.constant 0 : index
    %38 = vector.load %arg4[%c0_15, %c0_16, %c0_17, %c0_18] : memref<1x4x8x16xf32, #tpu.memory_space<vmem>>, vector<1x1x8x16xf32>
    %39 = vector.shape_cast %38 : vector<1x1x8x16xf32> to vector<8x16xf32>
    %cst_19 = arith.constant dense<0.000000e+00> : vector<8x16xf32>
    %40 = vector.multi_reduction <add>, %37, %cst_19 [0] : vector<2x8x16xf32> to vector<8x16xf32>
    %41 = arith.addf %39, %40 : vector<8x16xf32>
    %c0_20 = arith.constant 0 : index
    %c0_21 = arith.constant 0 : index
    %c0_22 = arith.constant 0 : index
    %c0_23 = arith.constant 0 : index
    %42 = vector.load %arg4[%c0_20, %c0_21, %c0_22, %c0_23] : memref<1x4x8x16xf32, #tpu.memory_space<vmem>>, vector<1x1x8x16xf32>
    %43 = vector.shape_cast %42 : vector<1x1x8x16xf32> to vector<8x16xf32>
    %44 = vector.shape_cast %41 : vector<8x16xf32> to vector<1x1x8x16xf32>
    tpu.vector_store %arg4[%c0_20, %c0_21, %c0_22, %c0_23], %44 {strides = array<i32>} : memref<1x4x8x16xf32, #tpu.memory_space<vmem>>, vector<1x1x8x16xf32>,
    %c0_24 = arith.constant 0 : index
    %c1 = arith.constant 1 : index
    %c0_25 = arith.constant 0 : index
    %c0_26 = arith.constant 0 : index
    %45 = vector.load %arg4[%c0_24, %c1, %c0_25, %c0_26] : memref<1x4x8x16xf32, #tpu.memory_space<vmem>>, vector<1x1x8x16xf32>
    %46 = vector.shape_cast %45 : vector<1x1x8x16xf32> to vector<8x16xf32>
    %47 = arith.mulf %28, %10 : vector<2x8x16xf32>
    %cst_27 = arith.constant dense<0.000000e+00> : vector<8x16xf32>
    %48 = vector.multi_reduction <add>, %47, %cst_27 [0] : vector<2x8x16xf32> to vector<8x16xf32>
    %49 = arith.addf %46, %48 : vector<8x16xf32>
    %c0_28 = arith.constant 0 : index
    %c1_29 = arith.constant 1 : index
    %c0_30 = arith.constant 0 : index
    %c0_31 = arith.constant 0 : index
    %50 = vector.load %arg4[%c0_28, %c1_29, %c0_30, %c0_31] : memref<1x4x8x16xf32, #tpu.memory_space<vmem>>, vector<1x1x8x16xf32>
    %51 = vector.shape_cast %50 : vector<1x1x8x16xf32> to vector<8x16xf32>
    %52 = vector.shape_cast %49 : vector<8x16xf32> to vector<1x1x8x16xf32>
    tpu.vector_store %arg4[%c0_28, %c1_29, %c0_30, %c0_31], %52 {strides = array<i32>} : memref<1x4x8x16xf32, #tpu.memory_space<vmem>>, vector<1x1x8x16xf32>,
    %c0_32 = arith.constant 0 : index
    %c2 = arith.constant 2 : index
    %c0_33 = arith.constant 0 : index
    %c0_34 = arith.constant 0 : index
    %53 = vector.load %arg4[%c0_32, %c2, %c0_33, %c0_34] : memref<1x4x8x16xf32, #tpu.memory_space<vmem>>, vector<1x1x8x16xf32>
    %54 = vector.shape_cast %53 : vector<1x1x8x16xf32> to vector<8x16xf32>
    %cst_35 = arith.constant dense<0.000000e+00> : vector<8x16xf32>
    %55 = vector.multi_reduction <add>, %28, %cst_35 [0] : vector<2x8x16xf32> to vector<8x16xf32>
    %56 = arith.addf %54, %55 : vector<8x16xf32>
    %c0_36 = arith.constant 0 : index
    %c2_37 = arith.constant 2 : index
    %c0_38 = arith.constant 0 : index
    %c0_39 = arith.constant 0 : index
    %57 = vector.load %arg4[%c0_36, %c2_37, %c0_38, %c0_39] : memref<1x4x8x16xf32, #tpu.memory_space<vmem>>, vector<1x1x8x16xf32>
    %58 = vector.shape_cast %57 : vector<1x1x8x16xf32> to vector<8x16xf32>
    %59 = vector.shape_cast %56 : vector<8x16xf32> to vector<1x1x8x16xf32>
    tpu.vector_store %arg4[%c0_36, %c2_37, %c0_38, %c0_39], %59 {strides = array<i32>} : memref<1x4x8x16xf32, #tpu.memory_space<vmem>>, vector<1x1x8x16xf32>,
    %c0_40 = arith.constant 0 : index
    %c3 = arith.constant 3 : index
    %c0_41 = arith.constant 0 : index
    %c0_42 = arith.constant 0 : index
    %60 = vector.load %arg4[%c0_40, %c3, %c0_41, %c0_42] : memref<1x4x8x16xf32, #tpu.memory_space<vmem>>, vector<1x1x8x16xf32>
    %61 = vector.shape_cast %60 : vector<1x1x8x16xf32> to vector<8x16xf32>
    %cst_43 = arith.constant dense<0.000000e+00> : vector<8x16xf32>
    %62 = vector.multi_reduction <add>, %10, %cst_43 [0] : vector<2x8x16xf32> to vector<8x16xf32>
    %63 = arith.addf %61, %62 : vector<8x16xf32>
    %c0_44 = arith.constant 0 : index
    %c3_45 = arith.constant 3 : index
    %c0_46 = arith.constant 0 : index
    %c0_47 = arith.constant 0 : index
    %64 = vector.load %arg4[%c0_44, %c3_45, %c0_46, %c0_47] : memref<1x4x8x16xf32, #tpu.memory_space<vmem>>, vector<1x1x8x16xf32>
    %65 = vector.shape_cast %64 : vector<1x1x8x16xf32> to vector<8x16xf32>
    %66 = vector.shape_cast %63 : vector<8x16xf32> to vector<1x1x8x16xf32>
    tpu.vector_store %arg4[%c0_44, %c3_45, %c0_46, %c0_47], %66 {strides = array<i32>} : memref<1x4x8x16xf32, #tpu.memory_space<vmem>>, vector<1x1x8x16xf32>,
    return
  }
  func.func @transform_0(%arg0: i32, %arg1: i32) -> (i32, i32, i32, i32) {
    %c0_i32 = arith.constant 0 : i32
    %c0_i32_0 = arith.constant 0 : i32
    %c0_i32_1 = arith.constant 0 : i32
    return %c0_i32, %arg0, %arg1, %c0_i32_0 : i32, i32, i32, i32
  }
  func.func @transform_1(%arg0: i32, %arg1: i32) -> (i32, i32, i32, i32) {
    %c0_i32 = arith.constant 0 : i32
    %c0_i32_0 = arith.constant 0 : i32
    %c0_i32_1 = arith.constant 0 : i32
    return %c0_i32, %arg0, %arg1, %c0_i32_0 : i32, i32, i32, i32
  }
  func.func @transform_2(%arg0: i32, %arg1: i32) -> (i32, i32, i32, i32) {
    %c0_i32 = arith.constant 0 : i32
    %c0_i32_0 = arith.constant 0 : i32
    %c0_i32_1 = arith.constant 0 : i32
    %c0_i32_2 = arith.constant 0 : i32
    return %arg0, %c0_i32, %c0_i32_0, %c0_i32_1 : i32, i32, i32, i32
  }
}

</mosaic_0001>

<llo_original>
// kernel: tpu_custom_call.1
$region0: #{tpu_custom_call.1}
  #allocation0 [shape = 'u32[]', space=smem, size = 0x4, offset = 0x4, fixed_abs, tag = 'smem constant byte address 0x4 - core index']
  #allocation1 [shape = 'u32[144,128]{1,0:T(1,128)}', space=vmem, size = 0x12000, scoped, tag = 'internal scratch']
  %s0 = inlined_call_operand.hbm [shape: f32[2,4,16,16], index: 0, kind: input, shape index: {}]
  %s1 = inlined_call_operand.hbm [shape: f32[2,4,16,16], index: 1, kind: input, shape index: {}]
  %s2 = inlined_call_operand.hbm [shape: f32[4,4,8,16], index: 2, kind: output, shape index: {}]
  %s3 = sld [smem:[#allocation0]]
  $region53: #{tpu_custom_call.1} parent=0
    _
  %s5 = ssub.s32 1, %s3
  %s6 = scalar_select 0, %s5, %s3
  $region1: #{tpu_custom_call.1} parent=0
    #allocation2 [shape = 'u8[16384]{0}', space=vmem, size = 0x4000, scoped, tag = 'input window, operand 0']
    #allocation3 [shape = 's32[2]{0}', space=sflag, size = 0x8, scoped, tag = 'scoped memory for tpu_custom_call.1']
    #allocation4 [shape = 's32[2]{0}', space=sflag, size = 0x8, scoped, tag = 'scoped memory for tpu_custom_call.1']
    #allocation5 [shape = 'u8[16384]{0}', space=vmem, size = 0x4000, scoped, tag = 'input window, operand 1']
    #allocation6 [shape = 's32[2]{0}', space=sflag, size = 0x8, scoped, tag = 'scoped memory for tpu_custom_call.1']
    #allocation7 [shape = 'u8[32768]{0}', space=vmem, size = 0x8000, scoped, tag = 'output window, operand 0']
    %7 = vsyncpa [#allocation3], 0
    %s8 = scalar_lea.sflag [#allocation3], 1
    %9 = vsyncpa %s8, 0
    %10 = vsyncpa [#allocation6], 0
    %s11 = scalar_lea.sflag [#allocation6], 1
    %12 = vsyncpa %s11, 0
    %13 = vsyncpa [#allocation4], 0
    %s14 = scalar_lea.sflag [#allocation4], 1
    %15 = vsyncpa %s14, 0
    loop: start=0, step=1, limit=10
    $region2: #{tpu_custom_call.1} parent=1 // loop_pre_header
      _
    $region3: #{tpu_custom_call.1} parent=1 // loop_header
      %s17 = sphi 0, %s21
      %p18 = scmp.ge.s32.totalorder %s17, 10
      %s24 = sphi 0, %s36
      %s25 = sphi 0, %s32
      %s26 = sphi 0, %s24
      %s27 = sphi 0, %s25
      %s28 = sphi 0, %s26
      %s29 = sphi 0, %s27
      %s41 = sphi 0, %s43
      %s44 = sphi 0, %s41
      %s45 = sphi 0, %s44
      %s61 = sphi 0, %s45
      %s69 = sphi 0, %s71
      %s72 = sphi 0, %s69
      %s73 = sphi 0, %s72
      %s89 = sphi 0, %s73
      %s95 = sphi 0, %s97
      %s98 = sphi 0, %s95
      %s99 = sphi 0, %s98
      %s115 = sphi 0, %s99
    $region4: #{tpu_custom_call.1} parent=1 // loop_header_branch
      %20 = sbr.rel (%p18) target = $region8
    $region5: #{tpu_custom_call.1} parent=1 // loop_body
      %s22 = ssub.s32 %s17, 1
      %s23 = ssub.s32 %s17, 2
      %s30 = sadd.s32 1, %s25
      %p31 = scmp.ge.s32.totalorder %s30, 2
      %s32 = scalar_select %p31, 0, %s30
      %s33 = sadd.s32 1, %s24
      %s34 = scalar_select %p31, %s33, %s24
      %p35 = scmp.ge.s32.totalorder %s34, 4
      %s36 = scalar_select %p35, 0, %s34
      %s37 = ssub.s32 %s24, %s36
      %s38 = ssub.s32 %s25, %s32
      %s39 = sor.u32 %s37, %s38
      %p40 = scmp.eq.s32.totalorder %s39, 0
      %s42 = sadd.s32 %s41, 1
      %s43 = scalar_select %p40, %s41, %s42
      %p46 = pneg %p40
      %p47 = scmp.eq.s32.totalorder %s17, 7
      %p48 = por %p46, %p47
      %p49 = scmp.ne.s32.totalorder %s41, %s44
      %p50 = scmp.eq.s32.totalorder %s17, 0
      %p51 = por %p49, %p50
      %p52 = scmp.ne.s32.totalorder %s41, %s44
      %p53 = scmp.eq.s32.totalorder %s22, 7
      %p54 = por %p52, %p53
      %p55 = scmp.ne.s32.totalorder %s44, %s45
      %p56 = scmp.eq.s32.totalorder %s22, 0
      %p57 = por %p55, %p56
      %p58 = scmp.ne.s32.totalorder %s44, %s45
      %p59 = scmp.eq.s32.totalorder %s23, 7
      %p60 = por %p58, %p59
      %p62 = scmp.ne.s32.totalorder %s45, %s61
      %p63 = scmp.eq.s32.totalorder %s23, 0
      %p64 = por %p62, %p63
      %s65 = ssub.s32 %s24, %s36
      %s66 = ssub.s32 %s25, %s32
      %s67 = sor.u32 %s65, %s66
      %p68 = scmp.eq.s32.totalorder %s67, 0
      %s70 = sadd.s32 %s69, 1
      %s71 = scalar_select %p68, %s69, %s70
      %p74 = pneg %p68
      %p75 = scmp.eq.s32.totalorder %s17, 7
      %p76 = por %p74, %p75
      %p77 = scmp.ne.s32.totalorder %s69, %s72
      %p78 = scmp.eq.s32.totalorder %s17, 0
      %p79 = por %p77, %p78
      %p80 = scmp.ne.s32.totalorder %s69, %s72
      %p81 = scmp.eq.s32.totalorder %s22, 7
      %p82 = por %p80, %p81
      %p83 = scmp.ne.s32.totalorder %s72, %s73
      %p84 = scmp.eq.s32.totalorder %s22, 0
      %p85 = por %p83, %p84
      %p86 = scmp.ne.s32.totalorder %s72, %s73
      %p87 = scmp.eq.s32.totalorder %s23, 7
      %p88 = por %p86, %p87
      %p90 = scmp.ne.s32.totalorder %s73, %s89
      %p91 = scmp.eq.s32.totalorder %s23, 0
      %p92 = por %p90, %p91
      %s93 = ssub.s32 %s24, %s36
      %p94 = scmp.eq.s32.totalorder %s93, 0
      %s96 = sadd.s32 %s95, 1
      %s97 = scalar_select %p94, %s95, %s96
      %p100 = pneg %p94
      %p101 = scmp.eq.s32.totalorder %s17, 7
      %p102 = por %p100, %p101
      %p103 = scmp.ne.s32.totalorder %s95, %s98
      %p104 = scmp.eq.s32.totalorder %s17, 0
      %p105 = por %p103, %p104
      %p106 = scmp.ne.s32.totalorder %s95, %s98
      %p107 = scmp.eq.s32.totalorder %s22, 7
      %p108 = por %p106, %p107
      %p109 = scmp.ne.s32.totalorder %s98, %s99
      %p110 = scmp.eq.s32.totalorder %s22, 0
      %p111 = por %p109, %p110
      %p112 = scmp.ne.s32.totalorder %s98, %s99
      %p113 = scmp.eq.s32.totalorder %s23, 7
      %p114 = por %p112, %p113
      %p116 = scmp.ne.s32.totalorder %s99, %s115
      %p117 = scmp.eq.s32.totalorder %s23, 0
      %p118 = por %p116, %p117
      %p119 = scmp.le.s32.totalorder 1, %s17
      %p120 = scmp.lt.s32.totalorder %s17, 9
      %p121 = pnand %p119, %p120
      %p122 = pneg %p121
      // Predicated region
      $region9: #{tpu_custom_call.1} parent=5 // pred_check
        _
      $region10: #{tpu_custom_call.1} parent=5 // pred_check_branch
        %124 = sbr.rel (%p121) target = $region12
      $region11: #{tpu_custom_call.1} parent=5 // pred_region
        %s125 = ssub.s32 %s17, 1
      $region12: #{tpu_custom_call.1} parent=5 // pred_fallthru
        _
      %p126 = scmp.lt.s32.totalorder %s17, 8
      // Predicated region
      $region13: #{tpu_custom_call.1} parent=5 // pred_check
        %p127 = pneg %p126
      $region14: #{tpu_custom_call.1} parent=5 // pred_check_branch
        %129 = sbr.rel (%p127) target = $region16
      $region15: #{tpu_custom_call.1} parent=5 // pred_region
        // Predicated region
        $region17: #{tpu_custom_call.1} parent=15 // pred_check
          %p130 = pneg %p51
        $region18: #{tpu_custom_call.1} parent=15 // pred_check_branch
          %132 = sbr.rel (%p130) target = $region20
        $region19: #{tpu_custom_call.1} parent=15 // pred_region
          %s133 = sand.u32 %s41, 1
          %s134 = scalar_lea.sflag [#allocation3], %s133
          %s135 = sand.u32 %s41, 1
          %s136 = smul.addr %s135, 16
          %s137 = scalar_lea.vmem [#allocation2], %s136
          %s139 = ssub.s32 256, 256
          %140 = vsyncadd %s134, %s139
          %s141 = smul.addr %s24, 2
          %s142 = sadd.s32 %s25, %s141
          %s143 = smul.addr %s142, 128
          %s144 = scalar_lea.hbm %s0, %s143
          %s145 = sshll.u32 %s137, 4
          %s146 = int_to_ptr.vmem [resolvable:$true] %s145
          %151 = dma.hbm_to_vmem [thread:$0]  %s144, 256, %s146, %s134, 1024, 128, 8
        $region20: #{tpu_custom_call.1} parent=15 // pred_fallthru
          _
        // Predicated region
        $region21: #{tpu_custom_call.1} parent=15 // pred_check
          %p152 = pneg %p79
        $region22: #{tpu_custom_call.1} parent=15 // pred_check_branch
          %154 = sbr.rel (%p152) target = $region24
        $region23: #{tpu_custom_call.1} parent=15 // pred_region
          %s155 = sand.u32 %s69, 1
          %s156 = scalar_lea.sflag [#allocation6], %s155
          %s157 = sand.u32 %s69, 1
          %s158 = smul.addr %s157, 16
          %s159 = scalar_lea.vmem [#allocation5], %s158
          %s161 = ssub.s32 256, 256
          %162 = vsyncadd %s156, %s161
          %s163 = smul.addr %s24, 2
          %s164 = sadd.s32 %s25, %s163
          %s165 = smul.addr %s164, 128
          %s166 = scalar_lea.hbm %s1, %s165
          %s167 = sshll.u32 %s159, 4
          %s168 = int_to_ptr.vmem [resolvable:$true] %s167
          %173 = dma.hbm_to_vmem [thread:$0]  %s166, 256, %s168, %s156, 1024, 128, 8
        $region24: #{tpu_custom_call.1} parent=15 // pred_fallthru
          _
      $region16: #{tpu_custom_call.1} parent=5 // pred_fallthru
        _
      %p174 = scmp.le.s32.totalorder 1, %s17
      %p175 = scmp.lt.s32.totalorder %s17, 9
      %p176 = pnand %p174, %p175
      %p177 = pneg %p176
      // Predicated region
      $region25: #{tpu_custom_call.1} parent=5 // pred_check
        _
      $region26: #{tpu_custom_call.1} parent=5 // pred_check_branch
        %179 = sbr.rel (%p176) target = $region28
      $region27: #{tpu_custom_call.1} parent=5 // pred_region
        %s180 = ssub.s32 %s17, 1
        %s181 = sand.u32 %s44, 1
        %s182 = scalar_lea.sflag [#allocation3], %s181
        %s183 = sand.u32 %s44, 1
        %s184 = smul.addr %s183, 16
        %s185 = scalar_lea.vmem [#allocation2], %s184
        // Predicated region
        $region29: #{tpu_custom_call.1} parent=27 // pred_check
          %p186 = pneg %p57
        $region30: #{tpu_custom_call.1} parent=27 // pred_check_branch
          %188 = sbr.rel (%p186) target = $region32
        $region31: #{tpu_custom_call.1} parent=27 // pred_region
          %189 = dma.done %s182, 256
        $region32: #{tpu_custom_call.1} parent=27 // pred_fallthru
          _
        %s190 = sand.u32 %s72, 1
        %s191 = scalar_lea.sflag [#allocation6], %s190
        %s192 = sand.u32 %s72, 1
        %s193 = smul.addr %s192, 16
        %s194 = scalar_lea.vmem [#allocation5], %s193
        // Predicated region
        $region33: #{tpu_custom_call.1} parent=27 // pred_check
          %p195 = pneg %p85
        $region34: #{tpu_custom_call.1} parent=27 // pred_check_branch
          %197 = sbr.rel (%p195) target = $region36
        $region35: #{tpu_custom_call.1} parent=27 // pred_region
          %198 = dma.done %s191, 256
        $region36: #{tpu_custom_call.1} parent=27 // pred_fallthru
          _
        %s199 = sand.u32 %s44, 1
        %s200 = scalar_lea.sflag [#allocation3], %s199
        %s201 = sand.u32 %s44, 1
        %s202 = smul.addr %s201, 16
        %s203 = scalar_lea.vmem [#allocation2], %s202
        %p204 = pneg %p57
        %p205 = pneg %p54
        %s206 = sand.u32 %s72, 1
        %s207 = scalar_lea.sflag [#allocation6], %s206
        %s208 = sand.u32 %s72, 1
        %s209 = smul.addr %s208, 16
        %s210 = scalar_lea.vmem [#allocation5], %s209
        %p211 = pneg %p85
        %p212 = pneg %p82
        %p213 = pneg %p111
        %p214 = pneg %p108
        %s215 = sand.u32 %s98, 1
        %s216 = scalar_lea.sflag [#allocation4], %s215
        %s217 = sand.u32 %s98, 1
        %s218 = smul.addr %s217, 32
        %s219 = scalar_lea.vmem [#allocation7], %s218
        %p220 = scmp.eq.s32.totalorder %s27, 0
        // Predicated region
        $region37: #{tpu_custom_call.1} parent=27 // pred_check
          %p221 = pneg %p220
        $region38: #{tpu_custom_call.1} parent=27 // pred_check_branch
          %223 = sbr.rel (%p221) target = $region40
        $region39: #{tpu_custom_call.1} parent=27 // pred_region
          %vm224 = vcmask 130048
          %225 = vst.msk [vmem:[%s219] sm:$0xff] %vm224, 0.0
          %226 = vst.msk [vmem:[%s219 + $0x8] sm:$0xff] %vm224, 0.0
          %227 = vst.msk [vmem:[%s219 + $0x10] sm:$0xff] %vm224, 0.0
          %228 = vst.msk [vmem:[%s219 + $0x18] sm:$0xff] %vm224, 0.0
        $region40: #{tpu_custom_call.1} parent=27 // pred_fallthru
          _
        %v229 = vld [vmem:[%s185] sm:$0xff]
        %v230 = vld [vmem:[%s185 + $0x8] sm:$0xff]
        %v231 = vld [vmem:[%s194] sm:$0xff]
        %v232 = vld [vmem:[%s194 + $0x8] sm:$0xff]
        %vm233 = vcmp.gt.f32.partialorder %v231, 0.0
        %vm234 = vcmp.gt.f32.partialorder %v232, 0.0
        %v235 = vsel %vm233, 1, 0
        %v236 = vsel %vm234, 1, 0
        %v237 = vcvt.s32.f32 %v235
        %v238 = vcvt.s32.f32 %v236
        %v239 = vand.u32 2147483647, %v229
        %v240 = vand.u32 2147483647, %v230
        %v241 = vsub.f32 0.0, %v239
        %v242 = vsub.f32 0.0, %v240
        %v243 = vmul.f32 %v241, 1.442695
        %v244 = vpow.pop %v243
        %v245 = vmul.f32 %v242, 1.442695
        %v246 = vpow.pop %v245
        %v247 = vadd.f32 %v244, 1.0
        %v248 = vlog2.pop %v247
        %v249 = vmul.f32 %v248, 0.6931472
        %v250 = vmul.f32 -0.5, %v244
        %v251 = vadd.f32 %v250, 1.0
        %v252 = vmul.f32 %v251, %v244
        %v253 = vand.u32 2147483647, %v244
        %vm254 = vcmp.lt.f32.partialorder %v253, 0.0004427343
        %v255 = vsel %vm254, %v252, %v249
        %v256 = vadd.f32 %v246, 1.0
        %v257 = vlog2.pop %v256
        %v258 = vmul.f32 %v257, 0.6931472
        %v259 = vmul.f32 -0.5, %v246
        %v260 = vadd.f32 %v259, 1.0
        %v261 = vmul.f32 %v260, %v246
        %v262 = vand.u32 2147483647, %v246
        %vm263 = vcmp.lt.f32.partialorder %v262, 0.0004427343
        %v264 = vsel %vm263, %v261, %v258
        %v265 = vmax.f32 %v229, 0.0
        %v266 = vmax.f32 %v230, 0.0
        %v267 = vmul.f32 %v229, %v237
        %v268 = vmul.f32 %v230, %v238
        %v269 = vsub.f32 %v265, %v267
        %v270 = vsub.f32 %v266, %v268
        %v271 = vadd.f32 %v269, %v255
        %v272 = vadd.f32 %v270, %v264
        %v273 = vadd.f32 %v244, 1.0
        %v274 = vadd.f32 %v246, 1.0
        %v275 = vrcp.pop %v273
        %v276 = vmul.f32 1.0, %v275
        %v277 = vrcp.pop %v274
        %v278 = vmul.f32 1.0, %v277
        %vm279 = vcmp.ge.f32.partialorder %v229, 0.0
        %vm280 = vcmp.ge.f32.partialorder %v230, 0.0
        %v281 = vmul.f32 %v244, %v276
        %v282 = vmul.f32 %v246, %v278
        %v283 = vsel %vm279, %v276, %v281
        %v284 = vsel %vm280, %v278, %v282
        %v285 = vadd.f32 %v237, %v283
        %v286 = vadd.f32 %v238, %v284
        %v287 = vmul.f32 %v237, 2.0
        %v288 = vmul.f32 %v238, 2.0
        %v289 = vmul.f32 %v287, %v283
        %v290 = vmul.f32 %v288, %v284
        %v291 = vsub.f32 %v285, %v289
        %v292 = vsub.f32 %v286, %v290
        %v293 = vmul.f32 %v291, 0.8
        %v294 = vmul.f32 %v292, 0.8
        %v295 = vmul.f32 %v293, %v291
        %v296 = vmul.f32 %v294, %v292
        %v297 = vmul.f32 %v295, %v271
        %v298 = vmul.f32 %v296, %v272
        %v299 = vld [vmem:[%s219] sm:$0xff]
        %vm300 = vcmask 130048
        %v301 = vsel %vm300, %v297, 0.0
        %v302 = vsel %vm300, %v298, 0.0
        %v303 = vadd.f32 %v301, %v302
        %v304 = vadd.f32 %v299, %v303
        %305 = vst.msk [vmem:[%s219] sm:$0xff] %vm300, %v304
        %s306 = scalar_lea.vmem %s219, 8 [#allocation7]
        %v307 = vld [vmem:[%s306] sm:$0xff]
        %v308 = vmul.f32 %v283, %v237
        %v309 = vmul.f32 %v284, %v238
        %v310 = vsel %vm300, %v308, 0.0
        %v311 = vsel %vm300, %v309, 0.0
        %v312 = vadd.f32 %v310, %v311
        %v313 = vadd.f32 %v307, %v312
        %314 = vst.msk [vmem:[%s306] sm:$0xff] %vm300, %v313
        %s315 = scalar_lea.vmem %s219, 16 [#allocation7]
        %v316 = vld [vmem:[%s315] sm:$0xff]
        %v317 = vsel %vm300, %v283, 0.0
        %v318 = vsel %vm300, %v284, 0.0
        %v319 = vadd.f32 %v317, %v318
        %v320 = vadd.f32 %v316, %v319
        %321 = vst.msk [vmem:[%s315] sm:$0xff] %vm300, %v320
        %s322 = scalar_lea.vmem %s219, 24 [#allocation7]
        %v323 = vld [vmem:[%s322] sm:$0xff]
        %v324 = vsel %vm300, %v237, 0.0
        %v325 = vsel %vm300, %v238, 0.0
        %v326 = vadd.f32 %v324, %v325
        %v327 = vadd.f32 %v323, %v326
        %328 = vst.msk [vmem:[%s322] sm:$0xff] %vm300, %v327
        %s329 = sand.u32 %s98, 1
        %s330 = scalar_lea.sflag [#allocation4], %s329
        %s331 = sand.u32 %s98, 1
        %s332 = smul.addr %s331, 32
        %s333 = scalar_lea.vmem [#allocation7], %s332
        // Predicated region
        $region41: #{tpu_custom_call.1} parent=27 // pred_check
          %p334 = pneg %p108
        $region42: #{tpu_custom_call.1} parent=27 // pred_check_branch
          %336 = sbr.rel (%p334) target = $region44
        $region43: #{tpu_custom_call.1} parent=27 // pred_region
          %s338 = ssub.s32 512, 512
          %339 = vsyncadd %s330, %s338
          %s340 = smul.addr %s26, 4
          %s341 = smul.addr %s340, 128
          %s342 = scalar_lea.hbm %s2, %s341
          %s343 = sshll.u32 %s333, 4
          %s344 = int_to_ptr.vmem [resolvable:$true] %s343
          %349 = dma.vmem_to_hbm [thread:$0]  %s344, 512, %s342, %s330, 128, 128, 8
        $region44: #{tpu_custom_call.1} parent=27 // pred_fallthru
          _
      $region28: #{tpu_custom_call.1} parent=5 // pred_fallthru
        _
      %p350 = scmp.le.s32.totalorder 2, %s17
      // Predicated region
      $region45: #{tpu_custom_call.1} parent=5 // pred_check
        %p351 = pneg %p350
      $region46: #{tpu_custom_call.1} parent=5 // pred_check_branch
        %353 = sbr.rel (%p351) target = $region48
      $region47: #{tpu_custom_call.1} parent=5 // pred_region
        %s354 = ssub.s32 %s17, 2
        // Predicated region
        $region49: #{tpu_custom_call.1} parent=47 // pred_check
          %p355 = pneg %p114
        $region50: #{tpu_custom_call.1} parent=47 // pred_check_branch
          %357 = sbr.rel (%p355) target = $region52
        $region51: #{tpu_custom_call.1} parent=47 // pred_region
          %s358 = sand.u32 %s99, 1
          %s359 = scalar_lea.sflag [#allocation4], %s358
          %s360 = sand.u32 %s99, 1
          %s361 = smul.addr %s360, 32
          %s362 = scalar_lea.vmem [#allocation7], %s361
          %363 = dma.done %s359, 512
        $region52: #{tpu_custom_call.1} parent=47 // pred_fallthru
          _
      $region48: #{tpu_custom_call.1} parent=5 // pred_fallthru
        _
    $region6: #{tpu_custom_call.1} parent=1 // loop_footer
      %s21 = sadd.s32 1, %s17
    $region7: #{tpu_custom_call.1} parent=1 // loop_footer_branch
      %16 = sbr.rel target = $region3
    $region8: #{tpu_custom_call.1} parent=1 // loop_exit
      _
    %364 = vsyncpa [#allocation3], 1
    %s365 = scalar_lea.sflag [#allocation3], 1
    %366 = vsyncpa %s365, 1
    %367 = vsyncpa [#allocation6], 1
    %s368 = scalar_lea.sflag [#allocation6], 1
    %369 = vsyncpa %s368, 1
    %370 = vsyncpa [#allocation4], 1
    %s371 = scalar_lea.sflag [#allocation4], 1
    %372 = vsyncpa %s371, 1

</llo_original>
